<compile_context>
chip_gen: v5e
topology: v5e:2x2
jax: 0.10.0
libtpu: 0.0.40
codegen_flags: <defaults>
</compile_context>

<pallas_src>
import functools
import math

import jax
import jax.numpy as jnp
from jax.experimental import pallas as pl
from jax.experimental.pallas import tpu as pltpu


def _layer_norm(v, gamma, beta, eps=1e-6):
    mean = jnp.mean(v, axis=-1, keepdims=True)
    var = jnp.sum((v - mean) ** 2, axis=-1, keepdims=True) / (v.shape[-1] - 1)
    std = jnp.sqrt(var)
    return gamma * (v - mean) / (std + eps) + beta


def _pick_tile(s, preferred):
    for t in preferred:
        if s % t == 0:
            return t
    return s


def _wspec(block_shape, index_map):
    """BlockSpec for constant-index (or per-batch-constant) operands.

    Single-buffered: double-buffering an operand whose index_map never changes
    (weights/biases) or changes only with the slow batch axis (K/V) only doubles
    VMEM residency without hiding any DMA.
    """
    return pl.BlockSpec(block_shape, index_map, pipeline_mode=pl.Buffered(1))


# ---------------- stage 1: LayerNorm1 + fused, pre-scaled QKV ----------------
def ln_qkv_kernel(x_ref, wqkv_ref, bqkv_ref, ln_ref, q_ref, k_ref, v_ref, *,
                  compute_dtype):
    x = x_ref[0].astype(jnp.float32)                       # (TS, D)
    xn = _layer_norm(x, ln_ref[0], ln_ref[1]).astype(compute_dtype)
    qkv = jnp.dot(xn, wqkv_ref[...], preferred_element_type=jnp.float32)
    qkv = (qkv + bqkv_ref[0].astype(jnp.float32)).astype(q_ref.dtype)  # (TS, 3D)
    d = q_ref.shape[-1]
    q_ref[0] = qkv[:, :d]          # 1/sqrt(d_k) already folded into W_q / b_q
    k_ref[0] = qkv[:, d:2 * d]
    v_ref[0] = qkv[:, 2 * d:]


# ---- stage 2: per-head attention + output proj + residual + LN2 + FFN ----
def attn_ffn_kernel(x_ref, q_ref, k_ref, v_ref, bias_ref,
                    wo_ref, bo_ref, w1_ref, b1_ref, w2_ref, b2_ref, ln_ref,
                    o_ref, *, num_heads, compute_dtype):
    x = x_ref[0].astype(jnp.float32)                       # (TQ, D) residual input
    q = q_ref[0]                                           # (TQ, D) pre-scaled
    k = k_ref[0]                                           # (S,  D)
    v = v_ref[0]                                           # (S,  D)
    bias = bias_ref[0]                                     # (1, S) additive mask bias
    d_k = q.shape[-1] // num_heads
    exact_recip = jnp.dtype(compute_dtype) == jnp.dtype(jnp.float32)
    dn = (((1,), (1,)), ((), ()))                          # contract last dims: q @ k^T

    # Head-chunked softmax: live working set O(TQ*S), not O(H*TQ*S).
    heads = []
    for h in range(num_heads):
        sl = slice(h * d_k, (h + 1) * d_k)
        s = jax.lax.dot_general(q[:, sl], k[:, sl], dn,
                                preferred_element_type=jnp.float32)      # (TQ, S)
        s = s + bias                                       # key-padding bias (add only)
        s = s - jnp.max(s, axis=-1, keepdims=True)
        e = jnp.exp(s)
        inv = pl.reciprocal(jnp.sum(e, axis=-1, keepdims=True),
                            approx=not exact_recip)
        p = (e * inv).astype(compute_dtype)
        heads.append(jnp.dot(p, v[:, sl],
                             preferred_element_type=jnp.float32))        # (TQ, d_k)

    # Output projection: concat(heads) @ W_o == one MXU contraction with K = D.
    attn_cat = jnp.concatenate(heads, axis=-1).astype(compute_dtype)     # (TQ, D)
    attn_out = jnp.dot(attn_cat, wo_ref[...], preferred_element_type=jnp.float32)
    x1 = x + attn_out + bo_ref[0].astype(jnp.float32)      # residual 1 (dropout = id)

    # Feed-forward on LayerNorm2(x1).
    xn2 = _layer_norm(x1, ln_ref[2], ln_ref[3]).astype(compute_dtype)
    hid = jnp.dot(xn2, w1_ref[...], preferred_element_type=jnp.float32)
    hid = jnp.maximum(hid + b1_ref[0].astype(jnp.float32), 0.0).astype(compute_dtype)
    ff = jnp.dot(hid, w2_ref[...], preferred_element_type=jnp.float32)
    ff = ff + b2_ref[0].astype(jnp.float32)

    o_ref[0] = (x1 + ff).astype(o_ref.dtype)               # residual 2


def encoder_block(x, mask, params, *, num_heads,
                  compute_dtype=jnp.bfloat16,
                  rows_per_tile=(512, 256, 128),
                  vmem_limit_bytes=48 * 1024 * 1024):
    """x: (B, S, D) f32, mask: (B, 1, S) f32 (nonzero = keep).

    Tuning notes: on v6e (128 MiB VMEM) pass rows_per_tile=(1024, 512, 256, 128);
    on v7x (64 MiB VMEM) pass rows_per_tile=(256, 128) and keep
    vmem_limit_bytes <= ~56 MiB so Mosaic retains internal scratch headroom.
    """
    B, S, D = x.shape
    assert D % num_heads == 0, "d_model must be divisible by num_heads"
    d_k = D // num_heads
    d_ff = params["w1"].shape[1]
    scale = 1.0 / math.sqrt(d_k)

    # ---- host-side parameter packing ----
    #   * fused QKV weight (one (D, 3D) matmul instead of three)
    #   * 1/sqrt(d_k) folded into W_q / b_q (kills a VALU pass over the scores)
    wqkv = jnp.concatenate(
        [params["wq"] * scale, params["wk"], params["wv"]],
        axis=1).astype(compute_dtype)                                    # (D, 3D)
    bqkv = jnp.concatenate(
        [params["bq"] * scale, params["bk"], params["bv"]],
        axis=1).astype(jnp.float32)                                      # (1, 3D)
    wo = params["wo"].astype(compute_dtype)                              # (D, D)
    w1 = params["w1"].astype(compute_dtype)                              # (D, d_ff)
    w2 = params["w2"].astype(compute_dtype)                              # (d_ff, D)
    ln = params["ln"].reshape(-1).astype(jnp.float32)                    # (4,) SMEM
    # Additive key-padding bias, computed once (replaces per-element
    # compare+select over the (TQ, S) scores with a single broadcast add).
    mask_bias = jnp.where(mask == 0.0, jnp.float32(-1e9), jnp.float32(0.0))

    cparams = pltpu.CompilerParams(
        dimension_semantics=("parallel", "parallel"),
        vmem_limit_bytes=vmem_limit_bytes)

    # ---------------- stage 1: LN1 + fused (scaled) QKV ----------------
    TS = _pick_tile(S, rows_per_tile)
    qkv_shape = jax.ShapeDtypeStruct((B, S, D), compute_dtype)
    row_spec_ts = pl.BlockSpec((1, TS, D), lambda b, s: (b, s, 0))
    q, k, v = pl.pallas_call(
        functools.partial(ln_qkv_kernel, compute_dtype=compute_dtype),
        out_shape=(qkv_shape, qkv_shape, qkv_shape),
        grid=(B, S // TS),
        in_specs=[
            row_spec_ts,                                           # x tile
            _wspec((D, 3 * D), lambda b, s: (0, 0)),               # fused QKV weight
            _wspec((1, 3 * D), lambda b, s: (0, 0)),               # fused QKV bias
            pl.BlockSpec(memory_space=pltpu.MemorySpace.SMEM),     # LN scalars
        ],
        out_specs=(row_spec_ts, row_spec_ts, row_spec_ts),         # q, k, v (B,S,D)
        compiler_params=cparams,
    )(x, wqkv, bqkv, ln)

    # ---------------- stage 2: attention + FFN ----------------
    TQ = _pick_tile(S, rows_per_tile)
    row_spec_tq = pl.BlockSpec((1, TQ, D), lambda b, i: (b, i, 0))
    out = pl.pallas_call(
        functools.partial(attn_ffn_kernel, num_heads=num_heads,
                          compute_dtype=compute_dtype),
        out_shape=jax.ShapeDtypeStruct((B, S, D), jnp.float32),
        grid=(B, S // TQ),
        in_specs=[
            row_spec_tq,                                           # residual x tile
            row_spec_tq,                                           # q tile (pre-scaled)
            _wspec((1, S, D), lambda b, i: (b, 0, 0)),             # k (per-batch resident)
            _wspec((1, S, D), lambda b, i: (b, 0, 0)),             # v (per-batch resident)
            pl.BlockSpec((1, 1, S), lambda b, i: (b, 0, 0)),       # additive mask bias
            _wspec((D, D), lambda b, i: (0, 0)),                   # W_o
            _wspec((1, D), lambda b, i: (0, 0)),                   # b_o
            _wspec((D, d_ff), lambda b, i: (0, 0)),                # W_1
            _wspec((1, d_ff), lambda b, i: (0, 0)),                # b_1
            _wspec((d_ff, D), lambda b, i: (0, 0)),                # W_2
            _wspec((1, D), lambda b, i: (0, 0)),                   # b_2
            pl.BlockSpec(memory_space=pltpu.MemorySpace.SMEM),     # LN scalars
        ],
        out_specs=row_spec_tq,
        compiler_params=cparams,
    )(x, q, k, v, mask_bias,
      wo, params["bo"].astype(jnp.float32),
      w1, params["b1"].astype(jnp.float32),
      w2, params["b2"].astype(jnp.float32), ln)
    return out


def encoder_block_ref(x, mask, params, *, num_heads):
    """Pure-JAX reference mirroring the PyTorch module (dropout = identity)."""
    B, S, D = x.shape
    d_k = D // num_heads
    g1, b1_ln, g2, b2_ln = params["ln"]

    xn = _layer_norm(x, g1, b1_ln)
    q = xn @ params["wq"] + params["bq"][0]
    k = xn @ params["wk"] + params["bk"][0]
    v = xn @ params["wv"] + params["bv"][0]

    def split(t):  # (B,S,D) -> (B,H,S,d_k)
        return t.reshape(B, S, num_heads, d_k).transpose(0, 2, 1, 3)

    qh, kh, vh = split(q), split(k), split(v)
    scores = jnp.einsum("bhqd,bhkd->bhqk", qh, kh) / math.sqrt(d_k)
    scores = jnp.where(mask[:, None, :, :] == 0.0, -1e9, scores)
    probs = jax.nn.softmax(scores, axis=-1)
    attn = jnp.einsum("bhqk,bhkd->bhqd", probs, vh)
    attn = attn.transpose(0, 2, 1, 3).reshape(B, S, D)
    x1 = x + (attn @ params["wo"] + params["bo"][0])

    xn2 = _layer_norm(x1, g2, b2_ln)
    ff = jnp.maximum(xn2 @ params["w1"] + params["b1"][0], 0.0) @ params["w2"] + params["b2"][0]
    return x1 + ff


if __name__ == "__main__":
    B, S, D, H, D_FF = 2, 8, 32, 4, 64

    key = jax.random.PRNGKey(0)
    ks = jax.random.split(key, 16)

    def lin_w(k, fan_in, fan_out):
        bound = 1.0 / math.sqrt(fan_in)
        # stored already transposed to (in, out) so kernels do x @ W
        return jax.random.uniform(k, (fan_in, fan_out), jnp.float32, -bound, bound)

    def lin_b(k, fan_in, fan_out):
        bound = 1.0 / math.sqrt(fan_in)
        return jax.random.uniform(k, (1, fan_out), jnp.float32, -bound, bound)

    params = {
        "wq": lin_w(ks[0], D, D),   "bq": lin_b(ks[1], D, D),
        "wk": lin_w(ks[2], D, D),   "bk": lin_b(ks[3], D, D),
        "wv": lin_w(ks[4], D, D),   "bv": lin_b(ks[5], D, D),
        "wo": lin_w(ks[6], D, D),   "bo": lin_b(ks[7], D, D),
        "w1": lin_w(ks[8], D, D_FF), "b1": lin_b(ks[9], D, D_FF),
        "w2": lin_w(ks[10], D_FF, D), "b2": lin_b(ks[11], D_FF, D),
        # LayerNorm scalars [gamma1, beta1, gamma2, beta2] (torch init: ones/zeros)
        "ln": jnp.array([1.0, 0.0, 1.0, 0.0], dtype=jnp.float32),
    }

    x = jax.random.normal(ks[12], (B, S, D), jnp.float32)
    # key-padding mask: last two positions of batch element 1 are padding
    mask = jnp.ones((B, 1, S), jnp.float32)
    mask = mask.at[1, 0, -2:].set(0.0)

    ref = jax.block_until_ready(encoder_block_ref(x, mask, params, num_heads=H))

    # f32 MXU operands + exact softmax reciprocal: tight correctness check.
    out_f32 = jax.block_until_ready(
        encoder_block(x, mask, params, num_heads=H, compute_dtype=jnp.float32))
    assert out_f32.shape == (B, S, D)
    assert jnp.allclose(out_f32, ref, rtol=1e-3, atol=1e-3), \
        float(jnp.max(jnp.abs(out_f32 - ref)))

    # bf16 MXU operands (default perf configuration): looser sanity check.
    out_bf16 = jax.block_until_ready(encoder_block(x, mask, params, num_heads=H))
    assert out_bf16.shape == (B, S, D)
    assert jnp.allclose(out_bf16, ref, rtol=1e-1, atol=1e-1), \
        float(jnp.max(jnp.abs(out_bf16 - ref)))

    print("KERNEL_OK")
</pallas_src>

<mosaic_0001>
module attributes {stable_mosaic.version = 11 : i64} {
  func.func @ln_qkv_kernel(%arg0: i32, %arg1: i32, %arg2: memref<1x8x32xf32, #tpu.memory_space<vmem>>, %arg3: memref<32x96xf32, #tpu.memory_space<vmem>>, %arg4: memref<1x96xf32, #tpu.memory_space<vmem>>, %arg5: memref<4xf32, #tpu.memory_space<smem>>, %arg6: memref<1x8x32xf32, #tpu.memory_space<vmem>>, %arg7: memref<1x8x32xf32, #tpu.memory_space<vmem>>, %arg8: memref<1x8x32xf32, #tpu.memory_space<vmem>>) attributes {dimension_semantics = [#tpu.dimension_semantics<parallel>, #tpu.dimension_semantics<parallel>], iteration_bounds = array<i64: 2, 1>, scalar_prefetch = 0 : i64, scratch_operands = 0 : i64, tpu.core_type = #tpu.core_type<tc>, window_params = [{transform_indices = @transform_0, window_bounds = array<i64: 1, 8, 32>}, {pipeline_mode = #tpu.pipeline_mode<synchronous>, transform_indices = @transform_1, window_bounds = array<i64: 32, 96>}, {pipeline_mode = #tpu.pipeline_mode<synchronous>, transform_indices = @transform_2, window_bounds = array<i64: 1, 96>}, {transform_indices = @transform_3, window_bounds = array<i64: 4>}, {transform_indices = @transform_4, window_bounds = array<i64: 1, 8, 32>}, {transform_indices = @transform_5, window_bounds = array<i64: 1, 8, 32>}, {transform_indices = @transform_6, window_bounds = array<i64: 1, 8, 32>}]} {
    %c0 = arith.constant 0 : index
    %c0_0 = arith.constant 0 : index
    %c0_1 = arith.constant 0 : index
    %0 = vector.load %arg2[%c0, %c0_0, %c0_1] : memref<1x8x32xf32, #tpu.memory_space<vmem>>, vector<1x8x32xf32>
    %1 = vector.shape_cast %0 : vector<1x8x32xf32> to vector<8x32xf32>
    %c0_2 = arith.constant 0 : index
    %2 = memref.load %arg5[%c0_2] : memref<4xf32, #tpu.memory_space<smem>>
    %c1 = arith.constant 1 : index
    %3 = memref.load %arg5[%c1] : memref<4xf32, #tpu.memory_space<smem>>
    %cst = arith.constant dense<0.000000e+00> : vector<8xf32>
    %4 = vector.multi_reduction <add>, %1, %cst [1] : vector<8x32xf32> to vector<8xf32>
    %5 = vector.shape_cast %4 : vector<8xf32> to vector<8x1xf32>
    %cst_3 = arith.constant 3.200000e+01 : f32
    %6 = vector.broadcast %cst_3 : f32 to vector<8x1xf32>
    %7 = arith.divf %5, %6 : vector<8x1xf32>
    %8 = vector.broadcast %7 : vector<8x1xf32> to vector<8x32xf32>
    %9 = arith.subf %1, %8 : vector<8x32xf32>
    %10 = arith.mulf %9, %9 : vector<8x32xf32>
    %cst_4 = arith.constant dense<0.000000e+00> : vector<8xf32>
    %11 = vector.multi_reduction <add>, %10, %cst_4 [1] : vector<8x32xf32> to vector<8xf32>
    %12 = vector.shape_cast %11 : vector<8xf32> to vector<8x1xf32>
    %cst_5 = arith.constant 3.100000e+01 : f32
    %13 = vector.broadcast %cst_5 : f32 to vector<8x1xf32>
    %14 = arith.divf %12, %13 : vector<8x1xf32>
    %15 = math.sqrt %14 : vector<8x1xf32>
    %16 = vector.broadcast %7 : vector<8x1xf32> to vector<8x32xf32>
    %17 = arith.subf %1, %16 : vector<8x32xf32>
    %18 = vector.broadcast %2 : f32 to vector<8x32xf32>
    %19 = arith.mulf %18, %17 : vector<8x32xf32>
    %cst_6 = arith.constant 9.99999997E-7 : f32
    %20 = vector.broadcast %cst_6 : f32 to vector<8x1xf32>
    %21 = arith.addf %15, %20 : vector<8x1xf32>
    %22 = vector.broadcast %21 : vector<8x1xf32> to vector<8x32xf32>
    %23 = arith.divf %19, %22 : vector<8x32xf32>
    %24 = vector.broadcast %3 : f32 to vector<8x32xf32>
    %25 = arith.addf %23, %24 : vector<8x32xf32>
    %c0_7 = arith.constant 0 : index
    %c0_8 = arith.constant 0 : index
    %26 = vector.load %arg3[%c0_7, %c0_8] : memref<32x96xf32, #tpu.memory_space<vmem>>, vector<32x96xf32>
    %cst_9 = arith.constant dense<0.000000e+00> : vector<8x96xf32>
    %27 = tpu.matmul %25, %26, %cst_9 {dimension_numbers = #tpu.dot_dimension_numbers<[1], [0], [0], [1], [0, 0, 1, 1], [], []>} : vector<8x32xf32>, vector<32x96xf32>, vector<8x96xf32> -> vector<8x96xf32>
    %c0_10 = arith.constant 0 : index
    %c0_11 = arith.constant 0 : index
    %28 = vector.load %arg4[%c0_10, %c0_11] : memref<1x96xf32, #tpu.memory_space<vmem>>, vector<1x96xf32>
    %29 = vector.shape_cast %28 : vector<1x96xf32> to vector<96xf32>
    %30 = vector.shape_cast %29 : vector<96xf32> to vector<1x96xf32>
    %31 = vector.broadcast %30 : vector<1x96xf32> to vector<8x96xf32>
    %32 = arith.addf %27, %31 : vector<8x96xf32>
    %33 = vector.extract_strided_slice %32 {offsets = [0, 0], sizes = [8, 32], strides = [1, 1]} : vector<8x96xf32> to vector<8x32xf32>
    %c0_12 = arith.constant 0 : index
    %c0_13 = arith.constant 0 : index
    %c0_14 = arith.constant 0 : index
    %34 = vector.load %arg6[%c0_12, %c0_13, %c0_14] : memref<1x8x32xf32, #tpu.memory_space<vmem>>, vector<1x8x32xf32>
    %35 = vector.shape_cast %34 : vector<1x8x32xf32> to vector<8x32xf32>
    %36 = vector.shape_cast %33 : vector<8x32xf32> to vector<1x8x32xf32>
    tpu.vector_store %arg6[%c0_12, %c0_13, %c0_14], %36 {strides = array<i32>} : memref<1x8x32xf32, #tpu.memory_space<vmem>>, vector<1x8x32xf32>,
    %37 = vector.extract_strided_slice %32 {offsets = [0, 32], sizes = [8, 32], strides = [1, 1]} : vector<8x96xf32> to vector<8x32xf32>
    %c0_15 = arith.constant 0 : index
    %c0_16 = arith.constant 0 : index
    %c0_17 = arith.constant 0 : index
    %38 = vector.load %arg7[%c0_15, %c0_16, %c0_17] : memref<1x8x32xf32, #tpu.memory_space<vmem>>, vector<1x8x32xf32>
    %39 = vector.shape_cast %38 : vector<1x8x32xf32> to vector<8x32xf32>
    %40 = vector.shape_cast %37 : vector<8x32xf32> to vector<1x8x32xf32>
    tpu.vector_store %arg7[%c0_15, %c0_16, %c0_17], %40 {strides = array<i32>} : memref<1x8x32xf32, #tpu.memory_space<vmem>>, vector<1x8x32xf32>,
    %41 = vector.extract_strided_slice %32 {offsets = [0, 64], sizes = [8, 32], strides = [1, 1]} : vector<8x96xf32> to vector<8x32xf32>
    %c0_18 = arith.constant 0 : index
    %c0_19 = arith.constant 0 : index
    %c0_20 = arith.constant 0 : index
    %42 = vector.load %arg8[%c0_18, %c0_19, %c0_20] : memref<1x8x32xf32, #tpu.memory_space<vmem>>, vector<1x8x32xf32>
    %43 = vector.shape_cast %42 : vector<1x8x32xf32> to vector<8x32xf32>
    %44 = vector.shape_cast %41 : vector<8x32xf32> to vector<1x8x32xf32>
    tpu.vector_store %arg8[%c0_18, %c0_19, %c0_20], %44 {strides = array<i32>} : memref<1x8x32xf32, #tpu.memory_space<vmem>>, vector<1x8x32xf32>,
    return
  }
  func.func @transform_0(%arg0: i32, %arg1: i32) -> (i32, i32, i32) {
    %c0_i32 = arith.constant 0 : i32
    %c0_i32_0 = arith.constant 0 : i32
    return %arg0, %arg1, %c0_i32 : i32, i32, i32
  }
  func.func @transform_1(%arg0: i32, %arg1: i32) -> (i32, i32) {
    %c0_i32 = arith.constant 0 : i32
    %c0_i32_0 = arith.constant 0 : i32
    %c0_i32_1 = arith.constant 0 : i32
    return %c0_i32, %c0_i32_0 : i32, i32
  }
  func.func @transform_2(%arg0: i32, %arg1: i32) -> (i32, i32) {
    %c0_i32 = arith.constant 0 : i32
    %c0_i32_0 = arith.constant 0 : i32
    %c0_i32_1 = arith.constant 0 : i32
    return %c0_i32, %c0_i32_0 : i32, i32
  }
  func.func @transform_3(%arg0: i32, %arg1: i32) -> i32 {
    %c0_i32 = arith.constant 0 : i32
    %c0_i32_0 = arith.constant 0 : i32
    return %c0_i32 : i32
  }
  func.func @transform_4(%arg0: i32, %arg1: i32) -> (i32, i32, i32) {
    %c0_i32 = arith.constant 0 : i32
    %c0_i32_0 = arith.constant 0 : i32
    return %arg0, %arg1, %c0_i32 : i32, i32, i32
  }
  func.func @transform_5(%arg0: i32, %arg1: i32) -> (i32, i32, i32) {
    %c0_i32 = arith.constant 0 : i32
    %c0_i32_0 = arith.constant 0 : i32
    return %arg0, %arg1, %c0_i32 : i32, i32, i32
  }
  func.func @transform_6(%arg0: i32, %arg1: i32) -> (i32, i32, i32) {
    %c0_i32 = arith.constant 0 : i32
    %c0_i32_0 = arith.constant 0 : i32
    return %arg0, %arg1, %c0_i32 : i32, i32, i32
  }
}

</mosaic_0001>

<llo_original>
// kernel: tpu_custom_call.1
$region0: #{tpu_custom_call.1}
  #allocation0 [shape = 'u32[]', space=smem, size = 0x4, offset = 0x4, fixed_abs, tag = 'smem constant byte address 0x4 - core index']
  #allocation1 [shape = 'u32[72,128]{1,0:T(1,128)}', space=vmem, size = 0x9000, scoped, tag = 'internal scratch']
  %s0 = inlined_call_operand.hbm [shape: f32[2,8,32], index: 0, kind: input, shape index: {}]
  %s1 = inlined_call_operand.hbm [shape: f32[32,96], index: 1, kind: input, shape index: {}]
  %s2 = inlined_call_operand.vmem [shape: f32[1,96], index: 2, kind: input, shape index: {}]
  %s3 = inlined_call_operand.vmem [shape: f32[4], index: 3, kind: input, shape index: {}]
  %s4 = inlined_call_operand.hbm [shape: f32[2,8,32], index: 4, kind: output, shape index: {0}]
  %s5 = inlined_call_operand.hbm [shape: f32[2,8,32], index: 5, kind: output, shape index: {1}]
  %s6 = inlined_call_operand.hbm [shape: f32[2,8,32], index: 6, kind: output, shape index: {2}]
  %7 = xla_tuple %s4, %s5, %s6
  %s8 = sld [smem:[#allocation0]]
  $region77: #{tpu_custom_call.1} parent=0
    _
  %s10 = ssub.s32 1, %s8
  %s11 = scalar_select 0, %s10, %s8
  $region1: #{tpu_custom_call.1} parent=0
    #allocation2 [shape = 'u8[8192]{0}', space=vmem, size = 0x2000, scoped, tag = 'input window, operand 0']
    #allocation3 [shape = 's32[2]{0}', space=sflag, size = 0x8, scoped, tag = 'scoped memory for tpu_custom_call.1']
    #allocation4 [shape = 's32[2]{0}', space=sflag, size = 0x8, scoped, tag = 'scoped memory for tpu_custom_call.1']
    #allocation5 [shape = 's32[2]{0}', space=sflag, size = 0x8, scoped, tag = 'scoped memory for tpu_custom_call.1']
    #allocation6 [shape = 'u8[16384]{0}', space=vmem, size = 0x4000, scoped, tag = 'input window, operand 1, single buffered']
    #allocation7 [shape = 's32[1]{0}', space=sflag, size = 0x4, scoped, tag = 'scoped memory for tpu_custom_call.1']
    #allocation8 [shape = 'u8[512]{0}', space=smem, size = 0x200, scoped, tag = 'input window, operand 3, single buffered']
    #allocation9 [shape = 'u8[8192]{0}', space=vmem, size = 0x2000, scoped, tag = 'output window, operand 0']
    #allocation10 [shape = 'u8[8192]{0}', space=vmem, size = 0x2000, scoped, tag = 'output window, operand 1']
    #allocation11 [shape = 's32[2]{0}', space=sflag, size = 0x8, scoped, tag = 'scoped memory for tpu_custom_call.1']
    #allocation12 [shape = 'u8[8192]{0}', space=vmem, size = 0x2000, scoped, tag = 'output window, operand 2']
    %12 = vsyncpa [#allocation3], 0
    %s13 = scalar_lea.sflag [#allocation3], 1
    %14 = vsyncpa %s13, 0
    %15 = vsyncpa [#allocation7], 0
    %16 = vsyncpa [#allocation5], 0
    %17 = vsyncpa [#allocation4], 0
    %s18 = scalar_lea.sflag [#allocation4], 1
    %19 = vsyncpa %s18, 0
    %20 = vsyncpa [#allocation11], 0
    %s21 = scalar_lea.sflag [#allocation11], 1
    %22 = vsyncpa %s21, 0
    loop: start=0, step=1, limit=4
    $region2: #{tpu_custom_call.1} parent=1 // loop_pre_header
      _
    $region3: #{tpu_custom_call.1} parent=1 // loop_header
      %s24 = sphi 0, %s28
      %p25 = scmp.ge.s32.totalorder %s24, 4
      %s31 = sphi 0, %s43
      %s32 = sphi 0, %s39
      %s33 = sphi 0, %s31
      %s34 = sphi 0, %s32
      %s35 = sphi 0, %s33
      %s36 = sphi 0, %s34
      %s48 = sphi 0, %s50
      %s51 = sphi 0, %s48
      %s52 = sphi 0, %s51
      %s68 = sphi 0, %s52
      %s72 = sphi 0, %s72
      %s74 = sphi 0, %s72
      %s75 = sphi 0, %s74
      %s89 = sphi 0, %s75
      %s93 = sphi 0, %s93
      %s95 = sphi 0, %s93
      %s96 = sphi 0, %s95
      %s110 = sphi 0, %s96
      %s114 = sphi 0, %s114
      %s116 = sphi 0, %s114
      %s117 = sphi 0, %s116
      %s131 = sphi 0, %s117
      %s139 = sphi 0, %s141
      %s142 = sphi 0, %s139
      %s143 = sphi 0, %s142
      %s159 = sphi 0, %s143
      %s167 = sphi 0, %s169
      %s170 = sphi 0, %s167
      %s171 = sphi 0, %s170
      %s187 = sphi 0, %s171
      %s195 = sphi 0, %s197
      %s198 = sphi 0, %s195
      %s199 = sphi 0, %s198
      %s215 = sphi 0, %s199
    $region4: #{tpu_custom_call.1} parent=1 // loop_header_branch
      %27 = sbr.rel (%p25) target = $region8
    $region5: #{tpu_custom_call.1} parent=1 // loop_body
      %s29 = ssub.s32 %s24, 1
      %s30 = ssub.s32 %s24, 2
      %s37 = sadd.s32 1, %s32
      %p38 = scmp.ge.s32.totalorder %s37, 1
      %s39 = scalar_select %p38, 0, %s37
      %s40 = sadd.s32 1, %s31
      %s41 = scalar_select %p38, %s40, %s31
      %p42 = scmp.ge.s32.totalorder %s41, 2
      %s43 = scalar_select %p42, 0, %s41
      %s44 = ssub.s32 %s31, %s43
      %s45 = ssub.s32 %s32, %s39
      %s46 = sor.u32 %s44, %s45
      %p47 = scmp.eq.s32.totalorder %s46, 0
      %s49 = sadd.s32 %s48, 1
      %s50 = scalar_select %p47, %s48, %s49
      %p53 = pneg %p47
      %p54 = scmp.eq.s32.totalorder %s24, 1
      %p55 = por %p53, %p54
      %p56 = scmp.ne.s32.totalorder %s48, %s51
      %p57 = scmp.eq.s32.totalorder %s24, 0
      %p58 = por %p56, %p57
      %p59 = scmp.ne.s32.totalorder %s48, %s51
      %p60 = scmp.eq.s32.totalorder %s29, 1
      %p61 = por %p59, %p60
      %p62 = scmp.ne.s32.totalorder %s51, %s52
      %p63 = scmp.eq.s32.totalorder %s29, 0
      %p64 = por %p62, %p63
      %p65 = scmp.ne.s32.totalorder %s51, %s52
      %p66 = scmp.eq.s32.totalorder %s30, 1
      %p67 = por %p65, %p66
      %p69 = scmp.ne.s32.totalorder %s52, %s68
      %p70 = scmp.eq.s32.totalorder %s30, 0
      %p71 = por %p69, %p70
      %s73 = sadd.s32 %s72, 1
      %p76 = scmp.eq.s32.totalorder %s24, 1
      %p77 = scmp.ne.s32.totalorder %s72, %s74
      %p78 = scmp.eq.s32.totalorder %s24, 0
      %p79 = por %p77, %p78
      %p80 = scmp.ne.s32.totalorder %s72, %s74
      %p81 = scmp.eq.s32.totalorder %s29, 1
      %p82 = por %p80, %p81
      %p83 = scmp.ne.s32.totalorder %s74, %s75
      %p84 = scmp.eq.s32.totalorder %s29, 0
      %p85 = por %p83, %p84
      %p86 = scmp.ne.s32.totalorder %s74, %s75
      %p87 = scmp.eq.s32.totalorder %s30, 1
      %p88 = por %p86, %p87
      %p90 = scmp.ne.s32.totalorder %s75, %s89
      %p91 = scmp.eq.s32.totalorder %s30, 0
      %p92 = por %p90, %p91
      %s94 = sadd.s32 %s93, 1
      %p97 = scmp.eq.s32.totalorder %s24, 1
      %p98 = scmp.ne.s32.totalorder %s93, %s95
      %p99 = scmp.eq.s32.totalorder %s24, 0
      %p100 = por %p98, %p99
      %p101 = scmp.ne.s32.totalorder %s93, %s95
      %p102 = scmp.eq.s32.totalorder %s29, 1
      %p103 = por %p101, %p102
      %p104 = scmp.ne.s32.totalorder %s95, %s96
      %p105 = scmp.eq.s32.totalorder %s29, 0
      %p106 = por %p104, %p105
      %p107 = scmp.ne.s32.totalorder %s95, %s96
      %p108 = scmp.eq.s32.totalorder %s30, 1
      %p109 = por %p107, %p108
      %p111 = scmp.ne.s32.totalorder %s96, %s110
      %p112 = scmp.eq.s32.totalorder %s30, 0
      %p113 = por %p111, %p112
      %s115 = sadd.s32 %s114, 1
      %p118 = scmp.eq.s32.totalorder %s24, 1
      %p119 = scmp.ne.s32.totalorder %s114, %s116
      %p120 = scmp.eq.s32.totalorder %s24, 0
      %p121 = por %p119, %p120
      %p122 = scmp.ne.s32.totalorder %s114, %s116
      %p123 = scmp.eq.s32.totalorder %s29, 1
      %p124 = por %p122, %p123
      %p125 = scmp.ne.s32.totalorder %s116, %s117
      %p126 = scmp.eq.s32.totalorder %s29, 0
      %p127 = por %p125, %p126
      %p128 = scmp.ne.s32.totalorder %s116, %s117
      %p129 = scmp.eq.s32.totalorder %s30, 1
      %p130 = por %p128, %p129
      %p132 = scmp.ne.s32.totalorder %s117, %s131
      %p133 = scmp.eq.s32.totalorder %s30, 0
      %p134 = por %p132, %p133
      %s135 = ssub.s32 %s31, %s43
      %s136 = ssub.s32 %s32, %s39
      %s137 = sor.u32 %s135, %s136
      %p138 = scmp.eq.s32.totalorder %s137, 0
      %s140 = sadd.s32 %s139, 1
      %s141 = scalar_select %p138, %s139, %s140
      %p144 = pneg %p138
      %p145 = scmp.eq.s32.totalorder %s24, 1
      %p146 = por %p144, %p145
      %p147 = scmp.ne.s32.totalorder %s139, %s142
      %p148 = scmp.eq.s32.totalorder %s24, 0
      %p149 = por %p147, %p148
      %p150 = scmp.ne.s32.totalorder %s139, %s142
      %p151 = scmp.eq.s32.totalorder %s29, 1
      %p152 = por %p150, %p151
      %p153 = scmp.ne.s32.totalorder %s142, %s143
      %p154 = scmp.eq.s32.totalorder %s29, 0
      %p155 = por %p153, %p154
      %p156 = scmp.ne.s32.totalorder %s142, %s143
      %p157 = scmp.eq.s32.totalorder %s30, 1
      %p158 = por %p156, %p157
      %p160 = scmp.ne.s32.totalorder %s143, %s159
      %p161 = scmp.eq.s32.totalorder %s30, 0
      %p162 = por %p160, %p161
      %s163 = ssub.s32 %s31, %s43
      %s164 = ssub.s32 %s32, %s39
      %s165 = sor.u32 %s163, %s164
      %p166 = scmp.eq.s32.totalorder %s165, 0
      %s168 = sadd.s32 %s167, 1
      %s169 = scalar_select %p166, %s167, %s168
      %p172 = pneg %p166
      %p173 = scmp.eq.s32.totalorder %s24, 1
      %p174 = por %p172, %p173
      %p175 = scmp.ne.s32.totalorder %s167, %s170
      %p176 = scmp.eq.s32.totalorder %s24, 0
      %p177 = por %p175, %p176
      %p178 = scmp.ne.s32.totalorder %s167, %s170
      %p179 = scmp.eq.s32.totalorder %s29, 1
      %p180 = por %p178, %p179
      %p181 = scmp.ne.s32.totalorder %s170, %s171
      %p182 = scmp.eq.s32.totalorder %s29, 0
      %p183 = por %p181, %p182
      %p184 = scmp.ne.s32.totalorder %s170, %s171
      %p185 = scmp.eq.s32.totalorder %s30, 1
      %p186 = por %p184, %p185
      %p188 = scmp.ne.s32.totalorder %s171, %s187
      %p189 = scmp.eq.s32.totalorder %s30, 0
      %p190 = por %p188, %p189
      %s191 = ssub.s32 %s31, %s43
      %s192 = ssub.s32 %s32, %s39
      %s193 = sor.u32 %s191, %s192
      %p194 = scmp.eq.s32.totalorder %s193, 0
      %s196 = sadd.s32 %s195, 1
      %s197 = scalar_select %p194, %s195, %s196
      %p200 = pneg %p194
      %p201 = scmp.eq.s32.totalorder %s24, 1
      %p202 = por %p200, %p201
      %p203 = scmp.ne.s32.totalorder %s195, %s198
      %p204 = scmp.eq.s32.totalorder %s24, 0
      %p205 = por %p203, %p204
      %p206 = scmp.ne.s32.totalorder %s195, %s198
      %p207 = scmp.eq.s32.totalorder %s29, 1
      %p208 = por %p206, %p207
      %p209 = scmp.ne.s32.totalorder %s198, %s199
      %p210 = scmp.eq.s32.totalorder %s29, 0
      %p211 = por %p209, %p210
      %p212 = scmp.ne.s32.totalorder %s198, %s199
      %p213 = scmp.eq.s32.totalorder %s30, 1
      %p214 = por %p212, %p213
      %p216 = scmp.ne.s32.totalorder %s199, %s215
      %p217 = scmp.eq.s32.totalorder %s30, 0
      %p218 = por %p216, %p217
      %p219 = scmp.le.s32.totalorder 1, %s24
      %p220 = scmp.lt.s32.totalorder %s24, 3
      %p221 = pnand %p219, %p220
      %p222 = pneg %p221
      // Predicated region
      $region9: #{tpu_custom_call.1} parent=5 // pred_check
        _
      $region10: #{tpu_custom_call.1} parent=5 // pred_check_branch
        %224 = sbr.rel (%p221) target = $region12
      $region11: #{tpu_custom_call.1} parent=5 // pred_region
        %s225 = ssub.s32 %s24, 1
        // Predicated region
        $region13: #{tpu_custom_call.1} parent=11 // pred_check
          %p226 = pneg %p85
        $region14: #{tpu_custom_call.1} parent=11 // pred_check_branch
          %228 = sbr.rel (%p226) target = $region16
        $region15: #{tpu_custom_call.1} parent=11 // pred_region
          %230 = vsyncadd [#allocation7], 0
          %s231 = sshll.u32 %s1, 4
          %s232 = int_to_ptr.hbm [resolvable:$true] %s231
          %s233 = sshll.u32 [#allocation6], 4
          %s234 = int_to_ptr.vmem [resolvable:$true] %s233
          %239 = dma.hbm_to_vmem [thread:$0]  %s232, 512, %s234, [#allocation7], 128, 128, 8
        $region16: #{tpu_custom_call.1} parent=11 // pred_fallthru
          _
        // Predicated region
        $region17: #{tpu_custom_call.1} parent=11 // pred_check
          %p240 = pneg %p106
        $region18: #{tpu_custom_call.1} parent=11 // pred_check_branch
          %242 = sbr.rel (%p240) target = $region20
        $region19: #{tpu_custom_call.1} parent=11 // pred_region
          _
        $region20: #{tpu_custom_call.1} parent=11 // pred_fallthru
          _
        // Predicated region
        $region21: #{tpu_custom_call.1} parent=11 // pred_check
          %p243 = pneg %p127
        $region22: #{tpu_custom_call.1} parent=11 // pred_check_branch
          %245 = sbr.rel (%p243) target = $region24
        $region23: #{tpu_custom_call.1} parent=11 // pred_region
          %247 = vsyncadd [#allocation5], 0
          %s249 = sshll.u32 %s3, 4
          %s250 = int_to_ptr.vmem [resolvable:$true] %s249
          %252 = dma.vmem_to_smem %s250, 16, [#allocation8], [#allocation5]
        $region24: #{tpu_custom_call.1} parent=11 // pred_fallthru
          _
      $region12: #{tpu_custom_call.1} parent=5 // pred_fallthru
        _
      %p253 = scmp.lt.s32.totalorder %s24, 2
      // Predicated region
      $region25: #{tpu_custom_call.1} parent=5 // pred_check
        %p254 = pneg %p253
      $region26: #{tpu_custom_call.1} parent=5 // pred_check_branch
        %256 = sbr.rel (%p254) target = $region28
      $region27: #{tpu_custom_call.1} parent=5 // pred_region
        // Predicated region
        $region29: #{tpu_custom_call.1} parent=27 // pred_check
          %p257 = pneg %p58
        $region30: #{tpu_custom_call.1} parent=27 // pred_check_branch
          %259 = sbr.rel (%p257) target = $region32
        $region31: #{tpu_custom_call.1} parent=27 // pred_region
          %s260 = sand.u32 %s48, 1
          %s261 = scalar_lea.sflag [#allocation3], %s260
          %s262 = sand.u32 %s48, 1
          %s263 = smul.addr %s262, 8
          %s264 = scalar_lea.vmem [#allocation2], %s263
          %266 = vsyncadd %s261, 0
          %s267 = sadd.s32 %s32, %s31
          %s268 = smul.addr %s267, 8
          %s269 = scalar_lea.hbm %s0, %s268
          %s271 = sshll.u32 %s269, 4
          %s272 = int_to_ptr.hbm [resolvable:$true] %s271
          %s273 = sshll.u32 %s264, 4
          %s274 = int_to_ptr.vmem [resolvable:$true] %s273
          %276 = dma.hbm_to_vmem [thread:$0]  %s272, 128, %s274, %s261
        $region32: #{tpu_custom_call.1} parent=27 // pred_fallthru
          _
      $region28: #{tpu_custom_call.1} parent=5 // pred_fallthru
        _
      %p277 = scmp.le.s32.totalorder 1, %s24
      %p278 = scmp.lt.s32.totalorder %s24, 3
      %p279 = pnand %p277, %p278
      %p280 = pneg %p279
      // Predicated region
      $region33: #{tpu_custom_call.1} parent=5 // pred_check
        _
      $region34: #{tpu_custom_call.1} parent=5 // pred_check_branch
        %282 = sbr.rel (%p279) target = $region36
      $region35: #{tpu_custom_call.1} parent=5 // pred_region
        %s283 = ssub.s32 %s24, 1
        %s284 = sand.u32 %s51, 1
        %s285 = scalar_lea.sflag [#allocation3], %s284
        %s286 = sand.u32 %s51, 1
        %s287 = smul.addr %s286, 8
        %s288 = scalar_lea.vmem [#allocation2], %s287
        // Predicated region
        $region37: #{tpu_custom_call.1} parent=35 // pred_check
          %p289 = pneg %p64
        $region38: #{tpu_custom_call.1} parent=35 // pred_check_branch
          %291 = sbr.rel (%p289) target = $region40
        $region39: #{tpu_custom_call.1} parent=35 // pred_region
          %293 = dma.done %s285, 128
        $region40: #{tpu_custom_call.1} parent=35 // pred_fallthru
          _
        // Predicated region
        $region41: #{tpu_custom_call.1} parent=35 // pred_check
          %p294 = pneg %p85
        $region42: #{tpu_custom_call.1} parent=35 // pred_check_branch
          %296 = sbr.rel (%p294) target = $region44
        $region43: #{tpu_custom_call.1} parent=35 // pred_region
          %298 = dma.done [#allocation7], 512
        $region44: #{tpu_custom_call.1} parent=35 // pred_fallthru
          _
        // Predicated region
        $region45: #{tpu_custom_call.1} parent=35 // pred_check
          %p299 = pneg %p127
        $region46: #{tpu_custom_call.1} parent=35 // pred_check_branch
          %301 = sbr.rel (%p299) target = $region48
        $region47: #{tpu_custom_call.1} parent=35 // pred_region
          %303 = dma.done [#allocation5], 16
        $region48: #{tpu_custom_call.1} parent=35 // pred_fallthru
          _
        %304 = sfence
        %s305 = sand.u32 %s51, 1
        %s306 = scalar_lea.sflag [#allocation3], %s305
        %s307 = sand.u32 %s51, 1
        %s308 = smul.addr %s307, 8
        %s309 = scalar_lea.vmem [#allocation2], %s308
        %p310 = pneg %p64
        %p311 = pneg %p61
        %p312 = pneg %p85
        %p313 = pneg %p82
        %p314 = pneg %p106
        %p315 = pneg %p103
        %p316 = pneg %p127
        %p317 = pneg %p124
        %p318 = pneg %p155
        %p319 = pneg %p152
        %s320 = sand.u32 %s142, 1
        %s321 = scalar_lea.sflag [#allocation4], %s320
        %s322 = sand.u32 %s142, 1
        %s323 = smul.addr %s322, 8
        %s324 = scalar_lea.vmem [#allocation9], %s323
        %p325 = pneg %p183
        %p326 = pneg %p180
        %s327 = sand.u32 %s29, 1
        %s328 = scalar_lea.sflag [#allocation11], %s327
        %s329 = sand.u32 %s170, 1
        %s330 = smul.addr %s329, 8
        %s331 = scalar_lea.vmem [#allocation10], %s330
        %p332 = pneg %p211
        %p333 = pneg %p208
        %s334 = sand.u32 %s29, 1
        %s335 = scalar_lea.sflag [#allocation11], %s334
        %s336 = sand.u32 %s198, 1
        %s337 = smul.addr %s336, 8
        %s338 = scalar_lea.vmem [#allocation12], %s337
        %v339 = vld [vmem:[%s288] sm:$0xff]
        %s340 = sld [smem:[#allocation8]]
        %s341 = sld [smem:[#allocation8 + $0x1]]
        %vm342 = vcmask 261120
        %v343 = vsel %vm342, %v339, 0.0
        %344 = vadd.xlane.f32.xlu0 %v343
        %v345 = vpop.xlane.xlu0 %344
        %v346 = vrcp.pop 32.0
        %v347 = vmul.f32 32.0, %v346
        %v348 = vsub.f32 1.0, %v347
        %v349 = vmul.f32 %v346, %v348
        %v350 = vadd.f32 %v346, %v349
        %vm351 = vweird.f32 %v346
        %v352 = vsel %vm351, %v346, %v350
        %v353 = vmul.f32 %v345, %v352
        %v354 = vsub.f32 %v339, %v353
        %v355 = vmul.f32 %v354, %v354
        %v356 = vsel %vm342, %v355, 0.0
        %357 = vadd.xlane.f32.xlu0 %v356
        %v358 = vpop.xlane.xlu0 %357
        %v359 = vrcp.pop 31.0
        %v360 = vmul.f32 31.0, %v359
        %v361 = vsub.f32 1.0, %v360
        %v362 = vmul.f32 %v359, %v361
        %v363 = vadd.f32 %v359, %v362
        %vm364 = vweird.f32 %v359
        %v365 = vsel %vm364, %v359, %v363
        %v366 = vmul.f32 %v358, %v365
        %v367 = vrsqrt.pop %v366
        %v368 = vmul.f32 %v367, %v366
        %v369 = vmul.f32 %v368, %v367
        %v370 = vmul.f32 0.5, %v369
        %v371 = vsub.f32 1.5, %v370
        %v372 = vmul.f32 %v367, %v371
        %v373 = vmul.f32 %v366, %v372
        %vm374 = vcmp.eq.f32.partialorder %v366, inf
        %v375 = vsel %vm374, %v366, %v373
        %vm376 = vcmp.eq.f32.partialorder %v366, 0.0
        %v377 = vand.u32 %v366, 2147483648
        %v378 = vsel %vm376, %v377, %v375
        %v379 = vstv %s340
        %v380 = vmul.f32 %v379, %v354
        %v381 = vadd.f32 %v378, 1e-06
        %v382 = vrcp.pop %v381
        %v383 = vmul.f32 %v381, %v382
        %v384 = vsub.f32 1.0, %v383
        %v385 = vmul.f32 %v382, %v384
        %v386 = vadd.f32 %v382, %v385
        %vm387 = vweird.f32 %v381
        %vm388 = vweird.f32 %v382
        %vm389 = vmor %vm387, %vm388
        %v390 = vsel %vm389, %v382, %v386
        %v391 = vand.u32 2147483647, %v381
        %vm392 = vcmp.eq.f32.partialorder %v391, 8.507059e+37
        %v393 = vand.u32 %v381, 2147483648
        %v394 = vor.u32 1.1754944e-38, %v393
        %v395 = vsel %vm392, %v394, %v390
        %v396 = vmul.f32 %v380, %v395
        %v397 = vstv %s341
        %v398 = vadd.f32 %v396, %v397
        %v399 = vld [vmem:[#allocation6] sm:$0xff]
        %v400 = vld [vmem:[#allocation6 + $0x8] sm:$0xff]
        %v401 = vld [vmem:[#allocation6 + $0x10] sm:$0xff]
        %v402 = vld [vmem:[#allocation6 + $0x18] sm:$0xff]
        %v403 = vld [vmem:[%s2] sm:$0x1]
        %v405 = vperm.slane %v403, 0
        %v408 = vsel %vm342, %v398, 0
        %410 = vmatpush.msra.mxu0 0.0
        %411 = vmatpush.msra.mxu0 0.0
        %412 = vmatpush.msra.mxu0 0.0
        %413 = vmatpush.msra.mxu0 0.0
        %414 = vmatpush.msra.mxu0 0.0
        %415 = vmatpush.msra.mxu0 0.0
        %416 = vmatpush.msra.mxu0 0.0
        %417 = vmatpush.msra.mxu0 0.0
        %418 = vmatpush.msra.mxu0 0.0
        %419 = vmatpush.msra.mxu0 0.0
        %420 = vmatpush.msra.mxu0 0.0
        %421 = vmatpush.msra.mxu0 0.0
        %422 = vmatpush.msra.mxu0 %v402
        %423 = vmatpush.msra.mxu0 %v401
        %424 = vmatpush.msra.mxu0 %v400
        %425 = vmatpush.msra.mxu0 %v399
        %426 = vmatmul.f32.gmra.mxu0 %v408
        %v427 = vpop.f32.mrf.mxu0
        %v428 = vadd.f32 %v405, %v427
        %429 = vdwg.mxu0
        %430 = vst.msk [vmem:[%s324] sm:$0xff] %vm342, %v428
        %432 = vrot.lane.b32.xlu0 %v428, 96
        %v433 = vpop.permute.xlu0 %432
        %435 = vst.msk [vmem:[%s331] sm:$0xff] %vm342, %v433
        %436 = vrot.lane.b32.xlu0 %v428, 64
        %v437 = vpop.permute.xlu0 %436
        %439 = vst.msk [vmem:[%s338] sm:$0xff] %vm342, %v437
        %s440 = sand.u32 %s142, 1
        %s441 = scalar_lea.sflag [#allocation4], %s440
        %s442 = sand.u32 %s142, 1
        %s443 = smul.addr %s442, 8
        %s444 = scalar_lea.vmem [#allocation9], %s443
        %s445 = sand.u32 %s29, 1
        %s446 = scalar_lea.sflag [#allocation11], %s445
        %s447 = sand.u32 %s170, 1
        %s448 = smul.addr %s447, 8
        %s449 = scalar_lea.vmem [#allocation10], %s448
        %s450 = sand.u32 %s29, 1
        %s451 = scalar_lea.sflag [#allocation11], %s450
        %s452 = sand.u32 %s198, 1
        %s453 = smul.addr %s452, 8
        %s454 = scalar_lea.vmem [#allocation12], %s453
        // Predicated region
        $region49: #{tpu_custom_call.1} parent=35 // pred_check
          %p455 = pneg %p152
        $region50: #{tpu_custom_call.1} parent=35 // pred_check_branch
          %457 = sbr.rel (%p455) target = $region52
        $region51: #{tpu_custom_call.1} parent=35 // pred_region
          %459 = vsyncadd %s441, 0
          %s460 = sadd.s32 %s34, %s33
          %s461 = smul.addr %s460, 8
          %s462 = scalar_lea.hbm %s4, %s461
          %s464 = sshll.u32 %s444, 4
          %s465 = int_to_ptr.vmem [resolvable:$true] %s464
          %s466 = sshll.u32 %s462, 4
          %s467 = int_to_ptr.hbm [resolvable:$true] %s466
          %469 = dma.vmem_to_hbm [thread:$0]  %s465, 128, %s467, %s441
        $region52: #{tpu_custom_call.1} parent=35 // pred_fallthru
          _
        // Predicated region
        $region53: #{tpu_custom_call.1} parent=35 // pred_check
          %p470 = pneg %p180
        $region54: #{tpu_custom_call.1} parent=35 // pred_check_branch
          %472 = sbr.rel (%p470) target = $region56
        $region55: #{tpu_custom_call.1} parent=35 // pred_region
          %474 = vsyncadd %s446, 0
          %s475 = sadd.s32 %s34, %s33
          %s476 = smul.addr %s475, 8
          %s477 = scalar_lea.hbm %s5, %s476
          %s479 = sshll.u32 %s449, 4
          %s480 = int_to_ptr.vmem [resolvable:$true] %s479
          %s481 = sshll.u32 %s477, 4
          %s482 = int_to_ptr.hbm [resolvable:$true] %s481
          %484 = dma.vmem_to_hbm [thread:$0]  %s480, 128, %s482, %s446
        $region56: #{tpu_custom_call.1} parent=35 // pred_fallthru
          _
        // Predicated region
        $region57: #{tpu_custom_call.1} parent=35 // pred_check
          %p485 = pneg %p208
        $region58: #{tpu_custom_call.1} parent=35 // pred_check_branch
          %487 = sbr.rel (%p485) target = $region60
        $region59: #{tpu_custom_call.1} parent=35 // pred_region
          %489 = vsyncadd %s451, 0
          %s490 = sadd.s32 %s34, %s33
          %s491 = smul.addr %s490, 8
          %s492 = scalar_lea.hbm %s6, %s491
          %s494 = sshll.u32 %s454, 4
          %s495 = int_to_ptr.vmem [resolvable:$true] %s494
          %s496 = sshll.u32 %s492, 4
          %s497 = int_to_ptr.hbm [resolvable:$true] %s496
          %499 = dma.vmem_to_hbm [thread:$0]  %s495, 128, %s497, %s451
        $region60: #{tpu_custom_call.1} parent=35 // pred_fallthru
          _
      $region36: #{tpu_custom_call.1} parent=5 // pred_fallthru
        _
      %p500 = scmp.le.s32.totalorder 2, %s24
      // Predicated region
      $region61: #{tpu_custom_call.1} parent=5 // pred_check
        %p501 = pneg %p500
      $region62: #{tpu_custom_call.1} parent=5 // pred_check_branch
        %503 = sbr.rel (%p501) target = $region64
      $region63: #{tpu_custom_call.1} parent=5 // pred_region
        %s504 = ssub.s32 %s24, 2
        // Predicated region
        $region65: #{tpu_custom_call.1} parent=63 // pred_check
          %p505 = pneg %p158
        $region66: #{tpu_custom_call.1} parent=63 // pred_check_branch
          %507 = sbr.rel (%p505) target = $region68
        $region67: #{tpu_custom_call.1} parent=63 // pred_region
          %s508 = sand.u32 %s143, 1
          %s509 = scalar_lea.sflag [#allocation4], %s508
          %s510 = sand.u32 %s143, 1
          %s511 = smul.addr %s510, 8
          %s512 = scalar_lea.vmem [#allocation9], %s511
          %514 = dma.done %s509, 128
        $region68: #{tpu_custom_call.1} parent=63 // pred_fallthru
          _
        // Predicated region
        $region69: #{tpu_custom_call.1} parent=63 // pred_check
          %p515 = pneg %p186
        $region70: #{tpu_custom_call.1} parent=63 // pred_check_branch
          %517 = sbr.rel (%p515) target = $region72
        $region71: #{tpu_custom_call.1} parent=63 // pred_region
          %s518 = sand.u32 %s30, 1
          %s519 = scalar_lea.sflag [#allocation11], %s518
          %s520 = sand.u32 %s171, 1
          %s521 = smul.addr %s520, 8
          %s522 = scalar_lea.vmem [#allocation10], %s521
          %524 = dma.done %s519, 128
        $region72: #{tpu_custom_call.1} parent=63 // pred_fallthru
          _
        // Predicated region
        $region73: #{tpu_custom_call.1} parent=63 // pred_check
          %p525 = pneg %p214
        $region74: #{tpu_custom_call.1} parent=63 // pred_check_branch
          %527 = sbr.rel (%p525) target = $region76
        $region75: #{tpu_custom_call.1} parent=63 // pred_region
          %s528 = sand.u32 %s30, 1
          %s529 = scalar_lea.sflag [#allocation11], %s528
          %s530 = sand.u32 %s199, 1
          %s531 = smul.addr %s530, 8
          %s532 = scalar_lea.vmem [#allocation12], %s531
          %534 = dma.done %s529, 128
        $region76: #{tpu_custom_call.1} parent=63 // pred_fallthru
          _
      $region64: #{tpu_custom_call.1} parent=5 // pred_fallthru
        _
    $region6: #{tpu_custom_call.1} parent=1 // loop_footer
      %s28 = sadd.s32 1, %s24
    $region7: #{tpu_custom_call.1} parent=1 // loop_footer_branch
      %23 = sbr.rel target = $region3
    $region8: #{tpu_custom_call.1} parent=1 // loop_exit
      _
    %535 = vsyncpa [#allocation3], 1
    %s536 = scalar_lea.sflag [#allocation3], 1
    %537 = vsyncpa %s536, 1
    %538 = vsyncpa [#allocation7], 1
    %539 = vsyncpa [#allocation4], 1
    %s540 = scalar_lea.sflag [#allocation4], 1
    %541 = vsyncpa %s540, 1
    %542 = vsyncpa [#allocation11], 1
    %s543 = scalar_lea.sflag [#allocation11], 1
    %544 = vsyncpa %s543, 1
    %545 = vsyncpa [#allocation5], 1
    %s546 = scalar_lea.sflag [#allocation5], 1
    %547 = vsyncpa %s546, 1

</llo_original>
